<compile_context>
chip_gen: v7x
topology: tpu7x:2x2x1
jax: 0.10.0
libtpu: 0.0.40
codegen_flags: <defaults>
</compile_context>

<pallas_src>
import functools
import math

import jax
import jax.numpy as jnp
from jax import lax
from jax.experimental import pallas as pl
from jax.experimental.pallas import tpu as pltpu

EPS = 1e-12          # F.normalize default eps
EPS_SQ = EPS * EPS   # max(sqrt(s), eps) == sqrt(max(s, eps^2))


def _l2_scale(sumsq):
    # 1 / max(||.||_2, eps) via rsqrt (EUP slot) instead of sqrt + divide.
    return lax.rsqrt(jnp.maximum(sumsq, EPS_SQ))


def netrvlad_kernel(x_ref, c_ref, o_ref, *scratch, k_real, add_batch_norm,
                    mm_dtype, acc_in_out):
    # x_ref: (bb, tn, D) current N-tile of a bb-batch fold
    # c_ref: (D, Kp)     (zero-padded) cluster matrix, grid-resident
    # o_ref: (bb, D, Kp) per-batch aggregates in torch's (D, K) layout
    bb, tn, D = x_ref.shape
    Kp = c_ref.shape[1]
    acc_ref = o_ref if acc_in_out else scratch[0]   # f32 accumulator

    ni = pl.program_id(1)

    @pl.when(ni == 0)
    def _init():
        acc_ref[...] = jnp.zeros_like(acc_ref)

    x3 = x_ref[...]                                         # (bb, tn, D)
    if add_batch_norm:
        xf = x3.astype(jnp.float32)
        xf = xf * _l2_scale(jnp.sum(xf * xf, axis=-1, keepdims=True))
        xmm3 = xf.astype(mm_dtype)
    else:
        # No f32 round trip needed on this path (no-op cast if dtypes match).
        xmm3 = x3.astype(mm_dtype)

    # assignment = softmax(x @ clusters) on the flattened (bb*tn, D) slab so
    # the MXU M dimension is bb*tn.
    logits = jnp.dot(xmm3.reshape(bb * tn, D),
                     c_ref[...].astype(mm_dtype),
                     preferred_element_type=jnp.float32)    # (bb*tn, Kp)
    if k_real < Kp:
        lane = lax.broadcasted_iota(jnp.int32, logits.shape, 1)
        logits = jnp.where(lane < k_real, logits, -1e30)    # mask padded K
    logits = logits - jnp.max(logits, axis=-1, keepdims=True)
    e = jnp.exp(logits)
    assign = e / jnp.sum(e, axis=-1, keepdims=True)         # exact softmax
    a3 = assign.astype(mm_dtype).reshape(bb, tn, Kp)        # (bb, tn, Kp)

    # acc[b, d, k] += sum_n x[b, n, d] * assign[b, n, k]  -- one batched MXU op
    acc_ref[...] += jnp.einsum("bnd,bnk->bdk", xmm3, a3,
                               preferred_element_type=jnp.float32)

    @pl.when(ni == pl.num_programs(1) - 1)
    def _finalize():
        rv = acc_ref[...].astype(jnp.float32)               # (bb, D, Kp)
        # intra-normalization: L2 over D (sublane axis) per cluster
        rv = rv * _l2_scale(jnp.sum(rv * rv, axis=1, keepdims=True))
        # global L2 over the flattened (D*K) descriptor
        g = jnp.sum(rv * rv, axis=2, keepdims=True)
        g = jnp.sum(g, axis=1, keepdims=True)
        rv = rv * _l2_scale(g)
        o_ref[...] = rv.astype(o_ref.dtype)


def _vmem_capacity_bytes():
    try:
        cap = getattr(pltpu.get_tpu_info(), "vmem_capacity_bytes", None)
        if cap:
            return int(cap)
    except Exception:
        pass
    return 64 * 1024 * 1024   # conservative default (v7x per-core VMEM)


def _choose_tiles(B, N, D, Kp, *, x_itemsize, out_itemsize, acc_in_out,
                  vmem_budget_bytes, row_target, max_bb):
    """Pick (bb, tn): biggest N tile under budget, then fold batches for MXU M."""
    divs_n = sorted({t for t in range(1, N + 1)
                     if N % t == 0 and (t % 8 == 0 or t == N)}, reverse=True)
    divs_b = [d for d in range(1, B + 1) if B % d == 0 and d <= max_bb] or [1]

    def bytes_needed(bb, tn):
        inp = 2 * bb * tn * D * x_itemsize            # double-buffered x tiles
        act = bb * tn * (D + Kp) * 4                  # normalized x + assignment
        out_bufs = 2 * bb * D * Kp * out_itemsize     # resident output block
        acc = 0 if acc_in_out else bb * D * Kp * 4    # f32 accumulator scratch
        clus = 2 * D * Kp * 4                         # cluster matrix buffers
        return inp + act + out_bufs + acc + clus

    # 1) largest tn that fits at bb=1 (fewer grid steps, fewer acc RMW passes)
    tn = next((t for t in divs_n if bytes_needed(1, t) <= vmem_budget_bytes),
              divs_n[-1])
    # 2) grow the batch fold until bb*tn fills the MXU M dimension
    bb = 1
    for d in divs_b:
        if bytes_needed(d, tn) > vmem_budget_bytes:
            break
        bb = d
        if d * tn >= row_target:
            break
    if bb > 1 and tn % 8 != 0:   # keep the (bb, tn, D)->(bb*tn, D) flatten aligned
        bb = 1
    return bb, tn


def netrvlad_forward(x, clusters, *, add_batch_norm=True, mxu_dtype=None,
                     row_target=256, vmem_budget_bytes=None, num_tensorcores=1):
    """x: (B, N, D), clusters: (D, K). Returns (B, K*D) matching the torch module."""
    B, N, D = x.shape
    K = clusters.shape[1]

    # Lane-dense K: zero-pad clusters to a multiple of 128; padded logit
    # columns are masked before the softmax inside the kernel.
    Kp = max(128, ((K + 127) // 128) * 128)
    if Kp != K:
        clusters = jnp.pad(clusters, ((0, 0), (0, Kp - K)))

    if mxu_dtype is None:
        mxu_dtype = jnp.bfloat16 if x.dtype == jnp.bfloat16 else jnp.float32

    out_dtype = x.dtype
    acc_in_out = jnp.dtype(out_dtype) == jnp.dtype(jnp.float32)

    cap = _vmem_capacity_bytes()
    if vmem_budget_bytes is None:
        vmem_budget_bytes = cap // 2
    vmem_limit = int(min(cap * 3 // 4, vmem_budget_bytes + (16 << 20)))

    max_bb = max(1, B // max(1, num_tensorcores))   # keep batch axis shardable
    bb, tn = _choose_tiles(
        B, N, D, Kp,
        x_itemsize=jnp.dtype(x.dtype).itemsize,
        out_itemsize=jnp.dtype(out_dtype).itemsize,
        acc_in_out=acc_in_out,
        vmem_budget_bytes=vmem_budget_bytes,
        row_target=row_target, max_bb=max_bb)
    grid = (B // bb, N // tn)

    kernel = functools.partial(netrvlad_kernel, k_real=K,
                               add_batch_norm=add_batch_norm,
                               mm_dtype=mxu_dtype, acc_in_out=acc_in_out)
    scratch_shapes = [] if acc_in_out else [pltpu.VMEM((bb, D, Kp), jnp.float32)]

    out = pl.pallas_call(
        kernel,
        out_shape=jax.ShapeDtypeStruct((B, D, Kp), out_dtype),
        grid_spec=pltpu.PrefetchScalarGridSpec(
            num_scalar_prefetch=0,
            grid=grid,
            in_specs=[
                pl.BlockSpec((bb, tn, D), lambda b, n: (b, n, 0)),
                pl.BlockSpec((D, Kp), lambda b, n: (0, 0)),
            ],
            out_specs=pl.BlockSpec((bb, D, Kp), lambda b, n: (b, 0, 0)),
            scratch_shapes=scratch_shapes,
        ),
        compiler_params=pltpu.CompilerParams(
            dimension_semantics=("parallel", "arbitrary"),
            vmem_limit_bytes=vmem_limit),
    )(x, clusters)

    if Kp != K:
        out = out[:, :, :K]
    # (B, D, K) row-major flatten == torch's d*K + k order: plain reshape.
    return out.reshape(B, D * K)


def netrvlad_reference(x, clusters, add_batch_norm=True):
    """Pure-JAX replica of the PyTorch forward (highest-precision matmuls)."""
    B, N, D = x.shape
    K = clusters.shape[1]
    xn = x.astype(jnp.float32)
    if add_batch_norm:
        xn = xn / jnp.maximum(jnp.linalg.norm(xn, axis=-1, keepdims=True), EPS)
    xf = xn.reshape(-1, D)
    logits = jnp.matmul(xf, clusters.astype(jnp.float32), precision="highest")
    a = jax.nn.softmax(logits, axis=1).reshape(B, N, K)
    a = jnp.transpose(a, (0, 2, 1))                                  # (B, K, N)
    rv = jnp.matmul(a, xn, precision="highest")                      # (B, K, D)
    rv = jnp.transpose(rv, (0, 2, 1))                                # (B, D, K)
    rv = rv / jnp.maximum(jnp.linalg.norm(rv, axis=1, keepdims=True), EPS)
    rv = rv.reshape(B, -1)
    rv = rv / jnp.maximum(jnp.linalg.norm(rv, axis=1, keepdims=True), EPS)
    return rv


if __name__ == "__main__":
    B, N, D, K = 2, 8, 32, 16  # batch, max_sample, feature_size, cluster_size

    key = jax.random.PRNGKey(0)
    kx, kc = jax.random.split(key)
    x = jax.random.normal(kx, (B, N, D), dtype=jnp.float32)
    # clusters = 1/sqrt(feature_size) * randn(feature_size, cluster_size)
    clusters = (1.0 / math.sqrt(D)) * jax.random.normal(
        kc, (D, K), dtype=jnp.float32)

    ref = netrvlad_reference(x, clusters)

    # 1) default (f32 MXU operands) path
    out = netrvlad_forward(x, clusters)
    jax.block_until_ready(out)
    assert out.shape == (B, K * D), out.shape
    err = float(jnp.max(jnp.abs(out - ref)))
    assert err < 3e-3, f"f32 path max|err|={err}"

    # 2) bf16 MXU operands (preferred on v5e/v6e/v7x bf16-native MXUs)
    out_bf = netrvlad_forward(x, clusters, mxu_dtype=jnp.bfloat16)
    jax.block_until_ready(out_bf)
    err_bf = float(jnp.max(jnp.abs(out_bf - ref)))
    assert err_bf < 3e-2, f"bf16-MXU path max|err|={err_bf}"

    # 3) add_batch_norm=False branch
    out_nb = netrvlad_forward(x, clusters, add_batch_norm=False)
    jax.block_until_ready(out_nb)
    ref_nb = netrvlad_reference(x, clusters, add_batch_norm=False)
    err_nb = float(jnp.max(jnp.abs(out_nb - ref_nb)))
    assert err_nb < 3e-3, f"no-batchnorm path max|err|={err_nb}"

    print("KERNEL_OK")
</pallas_src>

<mosaic_0001>
module attributes {stable_mosaic.version = 11 : i64} {
  func.func @netrvlad_kernel(%arg0: i32, %arg1: i32, %arg2: memref<2x8x32xf32, #tpu.memory_space<vmem>>, %arg3: memref<32x128xf32, #tpu.memory_space<vmem>>, %arg4: memref<2x32x128xf32, #tpu.memory_space<vmem>>) attributes {dimension_semantics = [#tpu.dimension_semantics<parallel>, #tpu.dimension_semantics<arbitrary>], iteration_bounds = array<i64: 1, 1>, scalar_prefetch = 0 : i64, scratch_operands = 0 : i64, tpu.core_type = #tpu.core_type<tc>, window_params = [{transform_indices = @transform_0, window_bounds = array<i64: 2, 8, 32>}, {pipeline_mode = #tpu.pipeline_mode<synchronous>, transform_indices = @transform_1, window_bounds = array<i64: 32, 128>}, {transform_indices = @transform_2, window_bounds = array<i64: 2, 32, 128>}]} {
    %c0_i32 = arith.constant 0 : i32
    %0 = arith.cmpi eq, %arg1, %c0_i32 : i32
    %1 = arith.extui %0 : i1 to i32
    %c0_i32_0 = arith.constant 0 : i32
    %2 = arith.cmpi ne, %1, %c0_i32_0 : i32
    scf.if %2 {
      %cst_19 = arith.constant 0.000000e+00 : f32
      %37 = vector.broadcast %cst_19 : f32 to vector<2x32x128xf32>
      %c0_20 = arith.constant 0 : index
      %c0_21 = arith.constant 0 : index
      %c0_22 = arith.constant 0 : index
      %38 = vector.load %arg4[%c0_20, %c0_21, %c0_22] : memref<2x32x128xf32, #tpu.memory_space<vmem>>, vector<2x32x128xf32>
      tpu.vector_store %arg4[%c0_20, %c0_21, %c0_22], %37 {strides = array<i32>} : memref<2x32x128xf32, #tpu.memory_space<vmem>>, vector<2x32x128xf32>,
    } else {
    }
    %c0 = arith.constant 0 : index
    %c0_1 = arith.constant 0 : index
    %c0_2 = arith.constant 0 : index
    %3 = vector.load %arg2[%c0, %c0_1, %c0_2] : memref<2x8x32xf32, #tpu.memory_space<vmem>>, vector<2x8x32xf32>
    %4 = arith.mulf %3, %3 : vector<2x8x32xf32>
    %cst = arith.constant dense<0.000000e+00> : vector<2x8xf32>
    %5 = vector.multi_reduction <add>, %4, %cst [2] : vector<2x8x32xf32> to vector<2x8xf32>
    %6 = vector.shape_cast %5 : vector<2x8xf32> to vector<2x8x1xf32>
    %cst_3 = arith.constant 1.000000e-24 : f32
    %7 = vector.broadcast %cst_3 : f32 to vector<2x8x1xf32>
    %8 = arith.maximumf %6, %7 : vector<2x8x1xf32>
    %9 = math.rsqrt %8 : vector<2x8x1xf32>
    %10 = vector.broadcast %9 : vector<2x8x1xf32> to vector<2x8x32xf32>
    %11 = arith.mulf %3, %10 : vector<2x8x32xf32>
    %12 = vector.shape_cast %11 : vector<2x8x32xf32> to vector<16x32xf32>
    %c0_4 = arith.constant 0 : index
    %c0_5 = arith.constant 0 : index
    %13 = vector.load %arg3[%c0_4, %c0_5] : memref<32x128xf32, #tpu.memory_space<vmem>>, vector<32x128xf32>
    %cst_6 = arith.constant dense<0.000000e+00> : vector<16x128xf32>
    %14 = tpu.matmul %12, %13, %cst_6 {dimension_numbers = #tpu.dot_dimension_numbers<[1], [0], [0], [1], [0, 0, 1, 1], [], []>} : vector<16x32xf32>, vector<32x128xf32>, vector<16x128xf32> -> vector<16x128xf32>
    %15 = tpu.iota {dimensions = array<i32: 1>} : vector<16x128xi32>
    %c16_i32 = arith.constant 16 : i32
    %16 = vector.broadcast %c16_i32 : i32 to vector<16x128xi32>
    %17 = arith.cmpi slt, %15, %16 : vector<16x128xi32>
    %cst_7 = arith.constant -1.000000e+30 : f32
    %18 = vector.broadcast %cst_7 : f32 to vector<16x128xf32>
    %19 = arith.select %17, %14, %18 : vector<16x128xi1>, vector<16x128xf32>
    %cst_8 = arith.constant dense<0xFF800000> : vector<16xf32>
    %20 = vector.multi_reduction <maximumf>, %19, %cst_8 [1] : vector<16x128xf32> to vector<16xf32>
    %21 = vector.shape_cast %20 : vector<16xf32> to vector<16x1xf32>
    %22 = vector.broadcast %21 : vector<16x1xf32> to vector<16x128xf32>
    %23 = arith.subf %19, %22 : vector<16x128xf32>
    %24 = math.exp %23 : vector<16x128xf32>
    %cst_9 = arith.constant dense<0.000000e+00> : vector<16xf32>
    %25 = vector.multi_reduction <add>, %24, %cst_9 [1] : vector<16x128xf32> to vector<16xf32>
    %26 = vector.shape_cast %25 : vector<16xf32> to vector<16x1xf32>
    %27 = vector.broadcast %26 : vector<16x1xf32> to vector<16x128xf32>
    %28 = arith.divf %24, %27 : vector<16x128xf32>
    %29 = vector.shape_cast %28 : vector<16x128xf32> to vector<2x8x128xf32>
    %c0_10 = arith.constant 0 : index
    %c0_11 = arith.constant 0 : index
    %c0_12 = arith.constant 0 : index
    %30 = vector.load %arg4[%c0_10, %c0_11, %c0_12] : memref<2x32x128xf32, #tpu.memory_space<vmem>>, vector<2x32x128xf32>
    "tpu.trace_start"() <{level = 10 : i32, message = "bnd,bnk->bdk"}> : () -> ()
    %cst_13 = arith.constant dense<0.000000e+00> : vector<2x32x128xf32>
    %31 = tpu.matmul %11, %29, %cst_13 {dimension_numbers = #tpu.dot_dimension_numbers<[1], [1], [2], [2], [0, 0, 0, 2, 1, 2], [0], [0]>} : vector<2x8x32xf32>, vector<2x8x128xf32>, vector<2x32x128xf32> -> vector<2x32x128xf32>
    "tpu.trace_stop"() : () -> ()
    %32 = arith.addf %30, %31 : vector<2x32x128xf32>
    %c0_14 = arith.constant 0 : index
    %c0_15 = arith.constant 0 : index
    %c0_16 = arith.constant 0 : index
    %33 = vector.load %arg4[%c0_14, %c0_15, %c0_16] : memref<2x32x128xf32, #tpu.memory_space<vmem>>, vector<2x32x128xf32>
    tpu.vector_store %arg4[%c0_14, %c0_15, %c0_16], %32 {strides = array<i32>} : memref<2x32x128xf32, #tpu.memory_space<vmem>>, vector<2x32x128xf32>,
    %c0_i32_17 = arith.constant 0 : i32
    %34 = arith.cmpi eq, %arg1, %c0_i32_17 : i32
    %35 = arith.extui %34 : i1 to i32
    %c0_i32_18 = arith.constant 0 : i32
    %36 = arith.cmpi ne, %35, %c0_i32_18 : i32
    scf.if %36 {
      %c0_19 = arith.constant 0 : index
      %c0_20 = arith.constant 0 : index
      %c0_21 = arith.constant 0 : index
      %37 = vector.load %arg4[%c0_19, %c0_20, %c0_21] : memref<2x32x128xf32, #tpu.memory_space<vmem>>, vector<2x32x128xf32>
      %38 = arith.mulf %37, %37 : vector<2x32x128xf32>
      %cst_22 = arith.constant dense<0.000000e+00> : vector<2x128xf32>
      %39 = vector.multi_reduction <add>, %38, %cst_22 [1] : vector<2x32x128xf32> to vector<2x128xf32>
      %40 = vector.shape_cast %39 : vector<2x128xf32> to vector<2x1x128xf32>
      %cst_23 = arith.constant 1.000000e-24 : f32
      %41 = vector.broadcast %cst_23 : f32 to vector<2x1x128xf32>
      %42 = arith.maximumf %40, %41 : vector<2x1x128xf32>
      %43 = math.rsqrt %42 : vector<2x1x128xf32>
      %44 = vector.broadcast %43 : vector<2x1x128xf32> to vector<2x32x128xf32>
      %45 = arith.mulf %37, %44 : vector<2x32x128xf32>
      %46 = arith.mulf %45, %45 : vector<2x32x128xf32>
      %cst_24 = arith.constant dense<0.000000e+00> : vector<2x32xf32>
      %47 = vector.multi_reduction <add>, %46, %cst_24 [2] : vector<2x32x128xf32> to vector<2x32xf32>
      %48 = vector.shape_cast %47 : vector<2x32xf32> to vector<2x32x1xf32>
      %cst_25 = arith.constant dense<0.000000e+00> : vector<2x1xf32>
      %49 = vector.multi_reduction <add>, %48, %cst_25 [1] : vector<2x32x1xf32> to vector<2x1xf32>
      %50 = vector.shape_cast %49 : vector<2x1xf32> to vector<2x1x1xf32>
      %cst_26 = arith.constant 1.000000e-24 : f32
      %51 = vector.broadcast %cst_26 : f32 to vector<2x1x1xf32>
      %52 = arith.maximumf %50, %51 : vector<2x1x1xf32>
      %53 = math.rsqrt %52 : vector<2x1x1xf32>
      %54 = vector.broadcast %53 : vector<2x1x1xf32> to vector<2x32x128xf32>
      %55 = arith.mulf %45, %54 : vector<2x32x128xf32>
      %c0_27 = arith.constant 0 : index
      %c0_28 = arith.constant 0 : index
      %c0_29 = arith.constant 0 : index
      %56 = vector.load %arg4[%c0_27, %c0_28, %c0_29] : memref<2x32x128xf32, #tpu.memory_space<vmem>>, vector<2x32x128xf32>
      tpu.vector_store %arg4[%c0_27, %c0_28, %c0_29], %55 {strides = array<i32>} : memref<2x32x128xf32, #tpu.memory_space<vmem>>, vector<2x32x128xf32>,
    } else {
    }
    return
  }
  func.func @transform_0(%arg0: i32, %arg1: i32) -> (i32, i32, i32) {
    %c0_i32 = arith.constant 0 : i32
    %c0_i32_0 = arith.constant 0 : i32
    return %arg0, %arg1, %c0_i32 : i32, i32, i32
  }
  func.func @transform_1(%arg0: i32, %arg1: i32) -> (i32, i32) {
    %c0_i32 = arith.constant 0 : i32
    %c0_i32_0 = arith.constant 0 : i32
    %c0_i32_1 = arith.constant 0 : i32
    return %c0_i32, %c0_i32_0 : i32, i32
  }
  func.func @transform_2(%arg0: i32, %arg1: i32) -> (i32, i32, i32) {
    %c0_i32 = arith.constant 0 : i32
    %c0_i32_0 = arith.constant 0 : i32
    %c0_i32_1 = arith.constant 0 : i32
    return %arg0, %c0_i32, %c0_i32_0 : i32, i32, i32
  }
}

</mosaic_0001>

<llo_original>
// kernel: tpu_custom_call.1
$region0: #{tpu_custom_call.1}
  #allocation0 [shape = 'u32[]', space=smem, size = 0x4, offset = 0x4, fixed_abs, tag = 'smem constant byte address 0x4 - core index']
  #allocation1 [shape = 'u32[144,128]{1,0:T(1,128)}', space=vmem, size = 0x12000, scoped, tag = 'internal scratch']
  %s0 = inlined_call_operand.hbm [shape: f32[2,8,32], index: 0, kind: input, shape index: {}]
  %s1 = inlined_call_operand.hbm [shape: f32[32,128], index: 1, kind: input, shape index: {}]
  %s2 = inlined_call_operand.hbm [shape: f32[2,32,128], index: 2, kind: output, shape index: {}]
  %s3 = sld [smem:[#allocation0]]
  $region34: #{tpu_custom_call.1} parent=0
    _
  %s5 = ssub.s32 1, %s3
  %s6 = scalar_select 0, %s5, %s3
  $region1: #{tpu_custom_call.1} parent=0
    #allocation2 [shape = 'u8[8192]{0}', space=vmem, size = 0x2000, scoped, tag = 'input window, operand 0, single buffered']
    #allocation3 [shape = 's32[1]{0}', space=sflag, size = 0x4, scoped, tag = 'scoped memory for tpu_custom_call.1']
    #allocation4 [shape = 's32[1]{0}', space=sflag, size = 0x4, scoped, tag = 'scoped memory for tpu_custom_call.1']
    #allocation5 [shape = 'u8[16384]{0}', space=vmem, size = 0x4000, scoped, tag = 'input window, operand 1, single buffered']
    #allocation6 [shape = 's32[1]{0}', space=sflag, size = 0x4, scoped, tag = 'scoped memory for tpu_custom_call.1']
    #allocation7 [shape = 'u8[32768]{0}', space=vmem, size = 0x8000, scoped, tag = 'output window, operand 0, single buffered']
    %7 = vsyncpa [#allocation3], 0
    %8 = vsyncpa [#allocation6], 0
    %9 = vsyncpa [#allocation4], 0
    // Predicated region
    $region2: #{tpu_custom_call.1} parent=1 // pred_check
      _
    $region3: #{tpu_custom_call.1} parent=1 // pred_check_branch
      %11 = sbr.rel (0) target = $region5
    $region4: #{tpu_custom_call.1} parent=1 // pred_region
      %s13 = ssub.s32 256, 256
      %14 = vsyncadd [#allocation3], %s13
      %s15 = sshll.u32 [#allocation2], 4
      %s16 = int_to_ptr.vmem [resolvable:$true] %s15
      %21 = dma.hbm_to_vmem [thread:$0]  %s0, 256, %s16, [#allocation3], 128, 128, 8
    $region5: #{tpu_custom_call.1} parent=1 // pred_fallthru
      _
    // Predicated region
    $region6: #{tpu_custom_call.1} parent=1 // pred_check
      _
    $region7: #{tpu_custom_call.1} parent=1 // pred_check_branch
      %23 = sbr.rel (0) target = $region9
    $region8: #{tpu_custom_call.1} parent=1 // pred_region
      %s25 = ssub.s32 512, 512
      %26 = vsyncadd [#allocation6], %s25
      %s27 = sshll.u32 [#allocation5], 4
      %s28 = int_to_ptr.vmem [resolvable:$true] %s27
      %33 = dma.hbm_to_vmem [thread:$0]  %s1, 512, %s28, [#allocation6], 128, 128, 8
    $region9: #{tpu_custom_call.1} parent=1 // pred_fallthru
      _
    // Predicated region
    $region10: #{tpu_custom_call.1} parent=1 // pred_check
      _
    $region11: #{tpu_custom_call.1} parent=1 // pred_check_branch
      %35 = sbr.rel (0) target = $region13
    $region12: #{tpu_custom_call.1} parent=1 // pred_region
      %36 = dma.done [#allocation3], 256
    $region13: #{tpu_custom_call.1} parent=1 // pred_fallthru
      _
    // Predicated region
    $region14: #{tpu_custom_call.1} parent=1 // pred_check
      _
    $region15: #{tpu_custom_call.1} parent=1 // pred_check_branch
      %38 = sbr.rel (0) target = $region17
    $region16: #{tpu_custom_call.1} parent=1 // pred_region
      %39 = dma.done [#allocation6], 512
    $region17: #{tpu_custom_call.1} parent=1 // pred_fallthru
      _
    %p40 = scmp.eq.s32.totalorder 0, 0
    // Predicated region
    $region18: #{tpu_custom_call.1} parent=1 // pred_check
      %p41 = pneg %p40
    $region19: #{tpu_custom_call.1} parent=1 // pred_check_branch
      %43 = sbr.rel (%p41) target = $region21
    $region20: #{tpu_custom_call.1} parent=1 // pred_region
      %44 = vst [vmem:[#allocation7] sm:$0xff] 0.0
      %45 = vst [vmem:[#allocation7 + $0x8] sm:$0xff] 0.0
      %46 = vst [vmem:[#allocation7 + $0x10] sm:$0xff] 0.0
      %47 = vst [vmem:[#allocation7 + $0x18] sm:$0xff] 0.0
      %48 = vst [vmem:[#allocation7 + $0x20] sm:$0xff] 0.0
      %49 = vst [vmem:[#allocation7 + $0x28] sm:$0xff] 0.0
      %50 = vst [vmem:[#allocation7 + $0x30] sm:$0xff] 0.0
      %51 = vst [vmem:[#allocation7 + $0x38] sm:$0xff] 0.0
    $region21: #{tpu_custom_call.1} parent=1 // pred_fallthru
      _
    %v52 = vld [vmem:[#allocation2] sm:$0xff]
    %v53 = vld [vmem:[#allocation2 + $0x8] sm:$0xff]
    %v54 = vmul.f32 %v52, %v52
    %v55 = vmul.f32 %v53, %v53
    %vm56 = vcmask 261120
    %v57 = vsel %vm56, %v54, 0.0
    %58 = vadd.xlane.f32.xlu0 %v57
    %v59 = vpop.xlane.xlu0 %58
    %v60 = vsel %vm56, %v55, 0.0
    %61 = vadd.xlane.f32.xlu0 %v60
    %v62 = vpop.xlane.xlu0 %61
    %v63 = vmax.f32 %v59, 1e-24
    %v64 = vmax.f32 %v62, 1e-24
    %v65 = vrsqrt.pop %v63
    %v66 = vrsqrt.pop %v64
    %v67 = vmul.f32 %v52, %v65
    %v68 = vmul.f32 %v53, %v66
    %v69 = vld [vmem:[#allocation5] sm:$0xff]
    %v70 = vld [vmem:[#allocation5 + $0x8] sm:$0xff]
    %v71 = vld [vmem:[#allocation5 + $0x10] sm:$0xff]
    %v72 = vld [vmem:[#allocation5 + $0x18] sm:$0xff]
    %v74 = vsel %vm56, %v67, 0
    %v77 = vsel %vm56, %v68, 0
    %79 = vmatprep.subr.mxu0 0.0
    %80 = vmatpush1.msra.mxu0 %v69
    %81 = vmatprep.subr.mxu0 0.0
    %82 = vmatpush1.msra.mxu0 %v70
    %83 = vmatprep.subr.mxu0 0.0
    %84 = vmatpush1.msra.mxu0 %v71
    %85 = vmatprep.subr.mxu0 0.0
    %86 = vmatpush1.msra.mxu0 %v72
    %87 = vmatprep.subr.mxu0 0.0
    %88 = vmatpush1.msra.mxu0 0.0
    %89 = vmatprep.subr.mxu0 0.0
    %90 = vmatpush1.msra.mxu0 0.0
    %91 = vmatprep.subr.mxu0 0.0
    %92 = vmatpush1.msra.mxu0 0.0
    %93 = vmatprep.subr.mxu0 0.0
    %94 = vmatpush1.msra.mxu0 0.0
    %95 = vmatprep.subr.mxu0 0.0
    %96 = vmatpush1.msra.mxu0 0.0
    %97 = vmatprep.subr.mxu0 0.0
    %98 = vmatpush1.msra.mxu0 0.0
    %99 = vmatprep.subr.mxu0 0.0
    %100 = vmatpush1.msra.mxu0 0.0
    %101 = vmatprep.subr.mxu0 0.0
    %102 = vmatpush1.msra.mxu0 0.0
    %103 = vmatprep.subr.mxu0 0.0
    %104 = vmatpush1.msra.mxu0 0.0
    %105 = vmatprep.subr.mxu0 0.0
    %106 = vmatpush1.msra.mxu0 0.0
    %107 = vmatprep.subr.mxu0 0.0
    %108 = vmatpush1.msra.mxu0 0.0
    %109 = vmatprep.subr.mxu0 0.0
    %110 = vmatpush1.msra.mxu0 0.0
    %111 = vmatprep.subr.mxu0 0.0
    %112 = vmatpush1.msra.mxu0 0.0
    %113 = vmatprep.subr.mxu0 0.0
    %114 = vmatpush1.msra.mxu0 0.0
    %115 = vmatprep.subr.mxu0 0.0
    %116 = vmatpush1.msra.mxu0 0.0
    %117 = vmatprep.subr.mxu0 0.0
    %118 = vmatpush1.msra.mxu0 0.0
    %119 = vmatprep.subr.mxu0 0.0
    %120 = vmatpush1.msra.mxu0 0.0
    %121 = vmatprep.subr.mxu0 0.0
    %122 = vmatpush1.msra.mxu0 0.0
    %123 = vmatprep.subr.mxu0 0.0
    %124 = vmatpush1.msra.mxu0 0.0
    %125 = vmatprep.subr.mxu0 0.0
    %126 = vmatpush1.msra.mxu0 0.0
    %127 = vmatprep.subr.mxu0 0.0
    %128 = vmatpush1.msra.mxu0 0.0
    %129 = vmatprep.subr.mxu0 0.0
    %130 = vmatpush1.msra.mxu0 0.0
    %131 = vmatprep.subr.mxu0 0.0
    %132 = vmatpush1.msra.mxu0 0.0
    %133 = vmatprep.subr.mxu0 0.0
    %134 = vmatpush1.msra.mxu0 0.0
    %135 = vmatprep.subr.mxu0 0.0
    %136 = vmatpush1.msra.mxu0 0.0
    %137 = vmatprep.subr.mxu0 0.0
    %138 = vmatpush1.msra.mxu0 0.0
    %139 = vmatprep.subr.mxu0 0.0
    %140 = vmatpush1.msra.mxu0 0.0
    %141 = vmatprep.subr.mxu0 0.0
    %142 = vmatpush1.msra.mxu0 0.0
    %143 = vmatprep.mubr.f32.mxu0 0.0
    %144 = vmatmul.mubr.f32.gmra.mrb[0].mxu0 %v74
    %v145 = vpop.f32.mrb[0].mxu0
    %v146 = vadd.f32 0.0, %v145
    %v147 = vpop.f32.mrb[0].mxu0
    %148 = vmatprep.mubr.f32.mxu0 0.0
    %149 = vmatmul.mubr.f32.gmra.mrb[0].mxu0 %v77
    %v150 = vpop.f32.mrb[0].mxu0
    %v151 = vadd.f32 0.0, %v150
    %v152 = vpop.f32.mrb[0].mxu0
    %153 = vdwg.mxu0
    %v154 = vlaneseq
    %v155 = vand.u32 %v154, 127
    %vm156 = vcmp.lt.s32.totalorder %v155, 16
    %v157 = vsel %vm156, %v146, -1e+30
    %v158 = vsel %vm156, %v151, -1e+30
    %159 = vmax.xlane.f32.xlu0 %v157
    %v160 = vpop.xlane.xlu0 %159
    %161 = vmax.xlane.f32.xlu0 %v158
    %v162 = vpop.xlane.xlu0 %161
    %v163 = vsub.f32 %v157, %v160
    %v164 = vsub.f32 %v158, %v162
    %v165 = vmul.f32 %v163, 1.442695
    %v166 = vpow.pop %v165
    %v167 = vmul.f32 %v164, 1.442695
    %v168 = vpow.pop %v167
    %169 = vadd.xlane.f32.xlu0 %v166
    %v170 = vpop.xlane.xlu0 %169
    %171 = vadd.xlane.f32.xlu0 %v168
    %v172 = vpop.xlane.xlu0 %171
    %v173 = vrcp.pop %v170
    %v174 = vmul.f32 %v166, %v173
    %v175 = vrcp.pop %v172
    %v176 = vmul.f32 %v168, %v175
    %v177 = vld [vmem:[#allocation7] sm:$0xff]
    %v178 = vld [vmem:[#allocation7 + $0x8] sm:$0xff]
    %v179 = vld [vmem:[#allocation7 + $0x10] sm:$0xff]
    %v180 = vld [vmem:[#allocation7 + $0x18] sm:$0xff]
    %v181 = vld [vmem:[#allocation7 + $0x20] sm:$0xff]
    %v182 = vld [vmem:[#allocation7 + $0x28] sm:$0xff]
    %v183 = vld [vmem:[#allocation7 + $0x30] sm:$0xff]
    %v184 = vld [vmem:[#allocation7 + $0x38] sm:$0xff]
    %185 = vxpose.xlu0.b32.start [1/16] %v67, 128
    %186 = vxpose.xlu0.b32.cont [2/16] 0.0, 128
    %187 = vxpose.xlu0.b32.cont [3/16] 0.0, 128
    %188 = vxpose.xlu0.b32.cont [4/16] 0.0, 128
    %189 = vxpose.xlu0.b32.cont [5/16] 0.0, 128
    %190 = vxpose.xlu0.b32.cont [6/16] 0.0, 128
    %191 = vxpose.xlu0.b32.cont [7/16] 0.0, 128
    %192 = vxpose.xlu0.b32.cont [8/16] 0.0, 128
    %193 = vxpose.xlu0.b32.cont [9/16] 0.0, 128
    %194 = vxpose.xlu0.b32.cont [10/16] 0.0, 128
    %195 = vxpose.xlu0.b32.cont [11/16] 0.0, 128
    %196 = vxpose.xlu0.b32.cont [12/16] 0.0, 128
    %197 = vxpose.xlu0.b32.cont [13/16] 0.0, 128
    %198 = vxpose.xlu0.b32.cont [14/16] 0.0, 128
    %199 = vxpose.xlu0.b32.cont [15/16] 0.0, 128
    %200 = vxpose.xlu0.b32.end [16/16] 0.0, 128
    %v201 = vpop.trf.xlu0
    %v202 = vpop.trf.xlu0
    %v203 = vpop.trf.xlu0
    %v204 = vpop.trf.xlu0
    %v205 = vpop.trf.xlu0
    %v206 = vpop.trf.xlu0
    %v207 = vpop.trf.xlu0
    %v208 = vpop.trf.xlu0
    %v209 = vpop.trf.xlu0
    %v210 = vpop.trf.xlu0
    %v211 = vpop.trf.xlu0
    %v212 = vpop.trf.xlu0
    %v213 = vpop.trf.xlu0
    %v214 = vpop.trf.xlu0
    %v215 = vpop.trf.xlu0
    %v216 = vpop.trf.xlu0
    %vm217 = vcmask 64512
    %v219 = vsel %vm217, %v201, 0
    %v222 = vsel %vm217, %v202, 0
    %v225 = vsel %vm217, %v203, 0
    %v228 = vsel %vm217, %v204, 0
    %230 = vmatprep.subr.mxu0 0.0
    %231 = vmatpush1.msra.mxu0 %v174
    %232 = vmatprep.subr.mxu0 0.0
    %233 = vmatpush1.msra.mxu0 0.0
    %234 = vmatprep.subr.mxu0 0.0
    %235 = vmatpush1.msra.mxu0 0.0
    %236 = vmatprep.subr.mxu0 0.0
    %237 = vmatpush1.msra.mxu0 0.0
    %238 = vmatprep.subr.mxu0 0.0
    %239 = vmatpush1.msra.mxu0 0.0
    %240 = vmatprep.subr.mxu0 0.0
    %241 = vmatpush1.msra.mxu0 0.0
    %242 = vmatprep.subr.mxu0 0.0
    %243 = vmatpush1.msra.mxu0 0.0
    %244 = vmatprep.subr.mxu0 0.0
    %245 = vmatpush1.msra.mxu0 0.0
    %246 = vmatprep.subr.mxu0 0.0
    %247 = vmatpush1.msra.mxu0 0.0
    %248 = vmatprep.subr.mxu0 0.0
    %249 = vmatpush1.msra.mxu0 0.0
    %250 = vmatprep.subr.mxu0 0.0
    %251 = vmatpush1.msra.mxu0 0.0
    %252 = vmatprep.subr.mxu0 0.0
    %253 = vmatpush1.msra.mxu0 0.0
    %254 = vmatprep.subr.mxu0 0.0
    %255 = vmatpush1.msra.mxu0 0.0
    %256 = vmatprep.subr.mxu0 0.0
    %257 = vmatpush1.msra.mxu0 0.0
    %258 = vmatprep.subr.mxu0 0.0
    %259 = vmatpush1.msra.mxu0 0.0
    %260 = vmatprep.subr.mxu0 0.0
    %261 = vmatpush1.msra.mxu0 0.0
    %262 = vmatprep.subr.mxu0 0.0
    %263 = vmatpush1.msra.mxu0 0.0
    %264 = vmatprep.subr.mxu0 0.0
    %265 = vmatpush1.msra.mxu0 0.0
    %266 = vmatprep.subr.mxu0 0.0
    %267 = vmatpush1.msra.mxu0 0.0
    %268 = vmatprep.subr.mxu0 0.0
    %269 = vmatpush1.msra.mxu0 0.0
    %270 = vmatprep.subr.mxu0 0.0
    %271 = vmatpush1.msra.mxu0 0.0
    %272 = vmatprep.subr.mxu0 0.0
    %273 = vmatpush1.msra.mxu0 0.0
    %274 = vmatprep.subr.mxu0 0.0
    %275 = vmatpush1.msra.mxu0 0.0
    %276 = vmatprep.subr.mxu0 0.0
    %277 = vmatpush1.msra.mxu0 0.0
    %278 = vmatprep.subr.mxu0 0.0
    %279 = vmatpush1.msra.mxu0 0.0
    %280 = vmatprep.subr.mxu0 0.0
    %281 = vmatpush1.msra.mxu0 0.0
    %282 = vmatprep.subr.mxu0 0.0
    %283 = vmatpush1.msra.mxu0 0.0
    %284 = vmatprep.subr.mxu0 0.0
    %285 = vmatpush1.msra.mxu0 0.0
    %286 = vmatprep.subr.mxu0 0.0
    %287 = vmatpush1.msra.mxu0 0.0
    %288 = vmatprep.subr.mxu0 0.0
    %289 = vmatpush1.msra.mxu0 0.0
    %290 = vmatprep.subr.mxu0 0.0
    %291 = vmatpush1.msra.mxu0 0.0
    %292 = vmatprep.subr.mxu0 0.0
    %293 = vmatpush1.msra.mxu0 0.0
    %294 = vmatprep.mubr.f32.mxu0 0.0
    %295 = vmatmul.mubr.f32.gmra.mrb[0].mxu0 %v219
    %v296 = vpop.f32.mrb[0].mxu0
    %v297 = vadd.f32 0.0, %v296
    %v298 = vpop.f32.mrb[0].mxu0
    %299 = vmatprep.mubr.f32.mxu0 0.0
    %300 = vmatmul.mubr.f32.gmra.mrb[0].mxu0 %v222
    %v301 = vpop.f32.mrb[0].mxu0
    %v302 = vadd.f32 0.0, %v301
    %v303 = vpop.f32.mrb[0].mxu0
    %304 = vmatprep.mubr.f32.mxu0 0.0
    %305 = vmatmul.mubr.f32.gmra.mrb[0].mxu0 %v225
    %v306 = vpop.f32.mrb[0].mxu0
    %v307 = vadd.f32 0.0, %v306
    %v308 = vpop.f32.mrb[0].mxu0
    %309 = vmatprep.mubr.f32.mxu0 0.0
    %310 = vmatmul.mubr.f32.gmra.mrb[0].mxu0 %v228
    %v311 = vpop.f32.mrb[0].mxu0
    %v312 = vadd.f32 0.0, %v311
    %v313 = vpop.f32.mrb[0].mxu0
    %314 = vdwg.mxu0
    %315 = vxpose.xlu0.b32.start [1/16] %v68, 128
    %316 = vxpose.xlu0.b32.cont [2/16] 0.0, 128
    %317 = vxpose.xlu0.b32.cont [3/16] 0.0, 128
    %318 = vxpose.xlu0.b32.cont [4/16] 0.0, 128
    %319 = vxpose.xlu0.b32.cont [5/16] 0.0, 128
    %320 = vxpose.xlu0.b32.cont [6/16] 0.0, 128
    %321 = vxpose.xlu0.b32.cont [7/16] 0.0, 128
    %322 = vxpose.xlu0.b32.cont [8/16] 0.0, 128
    %323 = vxpose.xlu0.b32.cont [9/16] 0.0, 128
    %324 = vxpose.xlu0.b32.cont [10/16] 0.0, 128
    %325 = vxpose.xlu0.b32.cont [11/16] 0.0, 128
    %326 = vxpose.xlu0.b32.cont [12/16] 0.0, 128
    %327 = vxpose.xlu0.b32.cont [13/16] 0.0, 128
    %328 = vxpose.xlu0.b32.cont [14/16] 0.0, 128
    %329 = vxpose.xlu0.b32.cont [15/16] 0.0, 128
    %330 = vxpose.xlu0.b32.end [16/16] 0.0, 128
    %v331 = vpop.trf.xlu0
    %v332 = vpop.trf.xlu0
    %v333 = vpop.trf.xlu0
    %v334 = vpop.trf.xlu0
    %v335 = vpop.trf.xlu0
    %v336 = vpop.trf.xlu0
    %v337 = vpop.trf.xlu0
    %v338 = vpop.trf.xlu0
    %v339 = vpop.trf.xlu0
    %v340 = vpop.trf.xlu0
    %v341 = vpop.trf.xlu0
    %v342 = vpop.trf.xlu0
    %v343 = vpop.trf.xlu0
    %v344 = vpop.trf.xlu0
    %v345 = vpop.trf.xlu0
    %v346 = vpop.trf.xlu0
    %v348 = vsel %vm217, %v331, 0
    %v351 = vsel %vm217, %v332, 0
    %v354 = vsel %vm217, %v333, 0
    %v357 = vsel %vm217, %v334, 0
    %359 = vmatprep.subr.mxu0 0.0
    %360 = vmatpush1.msra.mxu0 %v176
    %361 = vmatprep.subr.mxu0 0.0
    %362 = vmatpush1.msra.mxu0 0.0
    %363 = vmatprep.subr.mxu0 0.0
    %364 = vmatpush1.msra.mxu0 0.0
    %365 = vmatprep.subr.mxu0 0.0
    %366 = vmatpush1.msra.mxu0 0.0
    %367 = vmatprep.subr.mxu0 0.0
    %368 = vmatpush1.msra.mxu0 0.0
    %369 = vmatprep.subr.mxu0 0.0
    %370 = vmatpush1.msra.mxu0 0.0
    %371 = vmatprep.subr.mxu0 0.0
    %372 = vmatpush1.msra.mxu0 0.0
    %373 = vmatprep.subr.mxu0 0.0
    %374 = vmatpush1.msra.mxu0 0.0
    %375 = vmatprep.subr.mxu0 0.0
    %376 = vmatpush1.msra.mxu0 0.0
    %377 = vmatprep.subr.mxu0 0.0
    %378 = vmatpush1.msra.mxu0 0.0
    %379 = vmatprep.subr.mxu0 0.0
    %380 = vmatpush1.msra.mxu0 0.0
    %381 = vmatprep.subr.mxu0 0.0
    %382 = vmatpush1.msra.mxu0 0.0
    %383 = vmatprep.subr.mxu0 0.0
    %384 = vmatpush1.msra.mxu0 0.0
    %385 = vmatprep.subr.mxu0 0.0
    %386 = vmatpush1.msra.mxu0 0.0
    %387 = vmatprep.subr.mxu0 0.0
    %388 = vmatpush1.msra.mxu0 0.0
    %389 = vmatprep.subr.mxu0 0.0
    %390 = vmatpush1.msra.mxu0 0.0
    %391 = vmatprep.subr.mxu0 0.0
    %392 = vmatpush1.msra.mxu0 0.0
    %393 = vmatprep.subr.mxu0 0.0
    %394 = vmatpush1.msra.mxu0 0.0
    %395 = vmatprep.subr.mxu0 0.0
    %396 = vmatpush1.msra.mxu0 0.0
    %397 = vmatprep.subr.mxu0 0.0
    %398 = vmatpush1.msra.mxu0 0.0
    %399 = vmatprep.subr.mxu0 0.0
    %400 = vmatpush1.msra.mxu0 0.0
    %401 = vmatprep.subr.mxu0 0.0
    %402 = vmatpush1.msra.mxu0 0.0
    %403 = vmatprep.subr.mxu0 0.0
    %404 = vmatpush1.msra.mxu0 0.0
    %405 = vmatprep.subr.mxu0 0.0
    %406 = vmatpush1.msra.mxu0 0.0
    %407 = vmatprep.subr.mxu0 0.0
    %408 = vmatpush1.msra.mxu0 0.0
    %409 = vmatprep.subr.mxu0 0.0
    %410 = vmatpush1.msra.mxu0 0.0
    %411 = vmatprep.subr.mxu0 0.0
    %412 = vmatpush1.msra.mxu0 0.0
    %413 = vmatprep.subr.mxu0 0.0
    %414 = vmatpush1.msra.mxu0 0.0
    %415 = vmatprep.subr.mxu0 0.0
    %416 = vmatpush1.msra.mxu0 0.0
    %417 = vmatprep.subr.mxu0 0.0
    %418 = vmatpush1.msra.mxu0 0.0
    %419 = vmatprep.subr.mxu0 0.0
    %420 = vmatpush1.msra.mxu0 0.0
    %421 = vmatprep.subr.mxu0 0.0
    %422 = vmatpush1.msra.mxu0 0.0
    %423 = vmatprep.mubr.f32.mxu0 0.0
    %424 = vmatmul.mubr.f32.gmra.mrb[0].mxu0 %v348
    %v425 = vpop.f32.mrb[0].mxu0
    %v426 = vadd.f32 0.0, %v425
    %v427 = vpop.f32.mrb[0].mxu0
    %428 = vmatprep.mubr.f32.mxu0 0.0
    %429 = vmatmul.mubr.f32.gmra.mrb[0].mxu0 %v351
    %v430 = vpop.f32.mrb[0].mxu0
    %v431 = vadd.f32 0.0, %v430
    %v432 = vpop.f32.mrb[0].mxu0
    %433 = vmatprep.mubr.f32.mxu0 0.0
    %434 = vmatmul.mubr.f32.gmra.mrb[0].mxu0 %v354
    %v435 = vpop.f32.mrb[0].mxu0
    %v436 = vadd.f32 0.0, %v435
    %v437 = vpop.f32.mrb[0].mxu0
    %438 = vmatprep.mubr.f32.mxu0 0.0
    %439 = vmatmul.mubr.f32.gmra.mrb[0].mxu0 %v357
    %v440 = vpop.f32.mrb[0].mxu0
    %v441 = vadd.f32 0.0, %v440
    %v442 = vpop.f32.mrb[0].mxu0
    %443 = vdwg.mxu0
    %v444 = vadd.f32 %v177, %v297
    %v445 = vadd.f32 %v178, %v302
    %v446 = vadd.f32 %v179, %v307
    %v447 = vadd.f32 %v180, %v312
    %v448 = vadd.f32 %v181, %v426
    %v449 = vadd.f32 %v182, %v431
    %v450 = vadd.f32 %v183, %v436
    %v451 = vadd.f32 %v184, %v441
    %452 = vst [vmem:[#allocation7] sm:$0xff] %v444
    %453 = vst [vmem:[#allocation7 + $0x8] sm:$0xff] %v445
    %454 = vst [vmem:[#allocation7 + $0x10] sm:$0xff] %v446
    %455 = vst [vmem:[#allocation7 + $0x18] sm:$0xff] %v447
    %456 = vst [vmem:[#allocation7 + $0x20] sm:$0xff] %v448
    %457 = vst [vmem:[#allocation7 + $0x28] sm:$0xff] %v449
    %458 = vst [vmem:[#allocation7 + $0x30] sm:$0xff] %v450
    %459 = vst [vmem:[#allocation7 + $0x38] sm:$0xff] %v451
    // Predicated region
    $region22: #{tpu_custom_call.1} parent=1 // pred_check
      %p460 = pneg %p40
    $region23: #{tpu_custom_call.1} parent=1 // pred_check_branch
      %462 = sbr.rel (%p460) target = $region25
    $region24: #{tpu_custom_call.1} parent=1 // pred_region
      %v463 = vld [vmem:[#allocation7] sm:$0xff]
      %v464 = vld [vmem:[#allocation7 + $0x8] sm:$0xff]
      %v465 = vld [vmem:[#allocation7 + $0x10] sm:$0xff]
      %v466 = vld [vmem:[#allocation7 + $0x18] sm:$0xff]
      %v467 = vld [vmem:[#allocation7 + $0x20] sm:$0xff]
      %v468 = vld [vmem:[#allocation7 + $0x28] sm:$0xff]
      %v469 = vld [vmem:[#allocation7 + $0x30] sm:$0xff]
      %v470 = vld [vmem:[#allocation7 + $0x38] sm:$0xff]
      %v471 = vmul.f32 %v463, %v463
      %v472 = vmul.f32 %v464, %v464
      %v473 = vmul.f32 %v465, %v465
      %v474 = vmul.f32 %v466, %v466
      %v475 = vmul.f32 %v467, %v467
      %v476 = vmul.f32 %v468, %v468
      %v477 = vmul.f32 %v469, %v469
      %v478 = vmul.f32 %v470, %v470
      %v479 = vadd.f32 %v471, %v472
      %v480 = vadd.f32 %v479, %v473
      %v481 = vadd.f32 %v480, %v474
      %v482 = vrot.slane %v481, 4
      %v483 = vadd.f32 %v481, %v482
      %v484 = vrot.slane %v483, 2
      %v485 = vadd.f32 %v483, %v484
      %v486 = vrot.slane %v485, 1
      %v487 = vadd.f32 %v485, %v486
      %v488 = vadd.f32 %v475, %v476
      %v489 = vadd.f32 %v488, %v477
      %v490 = vadd.f32 %v489, %v478
      %v491 = vrot.slane %v490, 4
      %v492 = vadd.f32 %v490, %v491
      %v493 = vrot.slane %v492, 2
      %v494 = vadd.f32 %v492, %v493
      %v495 = vrot.slane %v494, 1
      %v496 = vadd.f32 %v494, %v495
      %v497 = vmax.f32 %v487, 1e-24
      %v498 = vmax.f32 %v496, 1e-24
      %v499 = vrsqrt.pop %v497
      %v500 = vrsqrt.pop %v498
      %v501 = vmul.f32 %v463, %v499
      %v502 = vmul.f32 %v464, %v499
      %v503 = vmul.f32 %v465, %v499
      %v504 = vmul.f32 %v466, %v499
      %v505 = vmul.f32 %v467, %v500
      %v506 = vmul.f32 %v468, %v500
      %v507 = vmul.f32 %v469, %v500
      %v508 = vmul.f32 %v470, %v500
      %v509 = vmul.f32 %v501, %v501
      %v510 = vmul.f32 %v502, %v502
      %v511 = vmul.f32 %v503, %v503
      %v512 = vmul.f32 %v504, %v504
      %v513 = vmul.f32 %v505, %v505
      %v514 = vmul.f32 %v506, %v506
      %v515 = vmul.f32 %v507, %v507
      %v516 = vmul.f32 %v508, %v508
      %517 = vadd.xlane.f32.xlu0 %v509
      %v518 = vpop.xlane.xlu0 %517
      %519 = vadd.xlane.f32.xlu0 %v510
      %v520 = vpop.xlane.xlu0 %519
      %521 = vadd.xlane.f32.xlu0 %v511
      %v522 = vpop.xlane.xlu0 %521
      %523 = vadd.xlane.f32.xlu0 %v512
      %v524 = vpop.xlane.xlu0 %523
      %525 = vadd.xlane.f32.xlu0 %v513
      %v526 = vpop.xlane.xlu0 %525
      %527 = vadd.xlane.f32.xlu0 %v514
      %v528 = vpop.xlane.xlu0 %527
      %529 = vadd.xlane.f32.xlu0 %v515
      %v530 = vpop.xlane.xlu0 %529
      %531 = vadd.xlane.f32.xlu0 %v516
      %v532 = vpop.xlane.xlu0 %531
      %v533 = vadd.f32 %v518, %v520
      %v534 = vadd.f32 %v533, %v522
      %v535 = vadd.f32 %v534, %v524
      %v536 = vrot.slane %v535, 4
      %v537 = vadd.f32 %v535, %v536
      %v538 = vrot.slane %v537, 2
      %v539 = vadd.f32 %v537, %v538
      %v540 = vrot.slane %v539, 1
      %v541 = vadd.f32 %v539, %v540
      %v542 = vadd.f32 %v526, %v528
      %v543 = vadd.f32 %v542, %v530
      %v544 = vadd.f32 %v543, %v532
      %v545 = vrot.slane %v544, 4
      %v546 = vadd.f32 %v544, %v545
      %v547 = vrot.slane %v546, 2
      %v548 = vadd.f32 %v546, %v547
      %v549 = vrot.slane %v548, 1
      %v550 = vadd.f32 %v548, %v549
      %v551 = vmax.f32 %v541, 1e-24
      %v552 = vmax.f32 %v550, 1e-24
      %v553 = vrsqrt.pop %v551
      %v554 = vrsqrt.pop %v552
      %v555 = vmul.f32 %v501, %v553
      %v556 = vmul.f32 %v502, %v553
      %v557 = vmul.f32 %v503, %v553
      %v558 = vmul.f32 %v504, %v553
      %v559 = vmul.f32 %v505, %v554
      %v560 = vmul.f32 %v506, %v554
      %v561 = vmul.f32 %v507, %v554
      %v562 = vmul.f32 %v508, %v554
      %563 = vst [vmem:[#allocation7] sm:$0xff] %v555
      %564 = vst [vmem:[#allocation7 + $0x8] sm:$0xff] %v556
      %565 = vst [vmem:[#allocation7 + $0x10] sm:$0xff] %v557
      %566 = vst [vmem:[#allocation7 + $0x18] sm:$0xff] %v558
      %567 = vst [vmem:[#allocation7 + $0x20] sm:$0xff] %v559
      %568 = vst [vmem:[#allocation7 + $0x28] sm:$0xff] %v560
      %569 = vst [vmem:[#allocation7 + $0x30] sm:$0xff] %v561
      %570 = vst [vmem:[#allocation7 + $0x38] sm:$0xff] %v562
    $region25: #{tpu_custom_call.1} parent=1 // pred_fallthru
      _
    // Predicated region
    $region26: #{tpu_custom_call.1} parent=1 // pred_check
      _
    $region27: #{tpu_custom_call.1} parent=1 // pred_check_branch
      %572 = sbr.rel (0) target = $region29
    $region28: #{tpu_custom_call.1} parent=1 // pred_region
      %s574 = ssub.s32 1024, 1024
      %575 = vsyncadd [#allocation4], %s574
      %s576 = sshll.u32 [#allocation7], 4
      %s577 = int_to_ptr.vmem [resolvable:$true] %s576
      %582 = dma.vmem_to_hbm [thread:$0]  %s577, 1024, %s2, [#allocation4], 128, 128, 8
    $region29: #{tpu_custom_call.1} parent=1 // pred_fallthru
      _
    // Predicated region
    $region30: #{tpu_custom_call.1} parent=1 // pred_check
      _
    $region31: #{tpu_custom_call.1} parent=1 // pred_check_branch
      %584 = sbr.rel (0) target = $region33
    $region32: #{tpu_custom_call.1} parent=1 // pred_region
      %585 = dma.done [#allocation4], 1024
    $region33: #{tpu_custom_call.1} parent=1 // pred_fallthru
      _
    %586 = vsyncpa [#allocation3], 1
    %587 = vsyncpa [#allocation6], 1
    %588 = vsyncpa [#allocation4], 1

</llo_original>
